<compile_context>
chip_gen: v5e
topology: v5e:2x2
jax: 0.10.0
libtpu: 0.0.40
codegen_flags: <defaults>
</compile_context>

<pallas_src>
import functools
import math

import numpy as np
import jax
import jax.numpy as jnp
from jax import lax
from jax.experimental import pallas as pl
from jax.experimental.pallas import tpu as pltpu


# Per pipelined input block, measured in ELEMENTS (dtype-agnostic) so bf16
# inputs don't blow up the f32 in-kernel temporaries.
_BLOCK_ELEM_BUDGET = 512 * 1024
# Target >= 8 grid steps: >= 4 per TensorCore on v7x, 8 pipelined steps on the
# single TC of v5e/v6e.
_TARGET_GRID_STEPS = 8
# Cap on packed lane width (keeps the segment matrices and min block small).
_MAX_PACKED_LANES = 4096
_VMEM_LIMIT_BYTES = 32 * 1024 * 1024     # safe on v5e/v6e (128 MiB phys) and v7x (64 MiB)


def _round_up(x, m):
    return (x + m - 1) // m * m


def _sublane(itemsize):
    """Rows per vreg sublane group: 8 for f32, 16 for bf16, 32 for int8/fp8."""
    return max(8, 32 // max(1, itemsize))


def _choose_row_tile(n_rows, row_elems, itemsize):
    """Row tile for the (rows, C) kernel.

    Bounded by the element budget (VMEM footprint incl. f32 temporaries),
    capped so the grid has >= _TARGET_GRID_STEPS steps when possible, and
    rounded to the dtype-aware sublane multiple.
    """
    sub = _sublane(itemsize)
    budget = max(sub, _BLOCK_ELEM_BUDGET // max(1, row_elems))
    target = _round_up(pl.cdiv(n_rows, _TARGET_GRID_STEPS), sub)
    tm = max(sub, min(budget, target))
    tm = max(sub, (tm // sub) * sub)
    return n_rows if tm >= n_rows else tm


def _choose_lane_tile(hw, c_pad, batch):
    """Lane tile (over H*W) for the channels_first kernel: multiple of 128."""
    budget = max(128, _BLOCK_ELEM_BUDGET // max(1, c_pad))
    steps_per_batch = pl.cdiv(_TARGET_GRID_STEPS, max(1, batch))
    target = _round_up(pl.cdiv(hw, steps_per_batch), 128)
    t = max(128, min(budget, target))
    t = max(128, (t // 128) * 128)
    return hw if t >= hw else t


def _pick_pack(n_rows, c):
    """Pack factor k so k*C is a multiple of 128 (lane-dense loads/stores).

    Applied whenever C % 128 != 0 (covers C = 96/192/48/... as well as C < 128),
    unless the packed width would be unreasonably wide or there are fewer rows
    than the pack factor.
    """
    if c % 128 == 0:
        return 1
    k = 128 // math.gcd(c, 128)          # == lcm(c, 128) // c
    if k * c > _MAX_PACKED_LANES or k > n_rows:
        return 1
    return k


# --------------------------------------------------------------------------
# Kernels
# --------------------------------------------------------------------------

def _ln_rows_kernel(x_ref, w_ref, b_ref, o_ref, *, eps, c):
    """channels_last, unpacked: normalize the full lane dim of each row.

    x_ref: (TM, C); w_ref/b_ref: (1, C).
    """
    x = x_ref[...].astype(jnp.float32)
    w = w_ref[...].astype(jnp.float32)
    b = b_ref[...].astype(jnp.float32)
    inv_c = jnp.float32(1.0 / c)

    mean = jnp.sum(x, axis=-1, keepdims=True) * inv_c
    xc = x - mean
    var = jnp.sum(xc * xc, axis=-1, keepdims=True) * inv_c
    y = xc * lax.rsqrt(var + eps)
    o_ref[...] = (y * w + b).astype(o_ref.dtype)


def _ln_rows_packed_kernel(x_ref, w_ref, b_ref, sred_ref, sbc_ref, o_ref, *, eps, c):
    """channels_last, lane-packed: normalize every length-C segment of the lanes.

    x_ref: (TM, k*C); w_ref/b_ref: (1, k*C) (weight/bias tiled k times).
    sred_ref: (k*C, k) 0/1 segment-sum matrix; sbc_ref: (k, k*C) broadcast-back.
    Both are resident constants (constant index_map) — no per-step iota work.
    The matmuls run on the otherwise idle MXU of this mem-bound kernel.
    """
    x = x_ref[...].astype(jnp.float32)
    w = w_ref[...].astype(jnp.float32)
    b = b_ref[...].astype(jnp.float32)
    sred = sred_ref[...]
    sbc = sbc_ref[...]
    inv_c = jnp.float32(1.0 / c)

    mean = jnp.dot(x, sred, preferred_element_type=jnp.float32) * inv_c
    xc = x - jnp.dot(mean, sbc, preferred_element_type=jnp.float32)
    var = jnp.dot(xc * xc, sred, preferred_element_type=jnp.float32) * inv_c
    inv = lax.rsqrt(var + eps)
    y = xc * jnp.dot(inv, sbc, preferred_element_type=jnp.float32)
    o_ref[...] = (y * w + b).astype(o_ref.dtype)


def _ln_cf_kernel(x_ref, w_ref, b_ref, o_ref, *, eps, c):
    """channels_first: reduce over C on the sublane axis, H*W stays on lanes.

    x_ref: (1, C, T); w_ref/b_ref: (1, C, 1).
    """
    x = x_ref[...][0].astype(jnp.float32)      # (C, T)
    w = w_ref[...][0].astype(jnp.float32)      # (C, 1)
    b = b_ref[...][0].astype(jnp.float32)
    inv_c = jnp.float32(1.0 / c)

    mean = jnp.sum(x, axis=0, keepdims=True) * inv_c       # (1, T) sublane reduce
    xc = x - mean
    var = jnp.sum(xc * xc, axis=0, keepdims=True) * inv_c
    y = xc * lax.rsqrt(var + eps) * w + b

    o_ref[...] = y[jnp.newaxis].astype(o_ref.dtype)


# --------------------------------------------------------------------------
# Wrappers
# --------------------------------------------------------------------------

def _ln_rows(x2d, weight, bias, eps):
    """LayerNorm over the last dim of a (N, C) array."""
    n, c = x2d.shape
    itemsize = x2d.dtype.itemsize

    k = _pick_pack(n, c)
    if k > 1 and n % k != 0:
        # Process the divisible bulk lane-packed and the tiny remainder
        # separately (no silent collapse to masked narrow stores).
        main = (n // k) * k
        y_main = _ln_rows(x2d[:main], weight, bias, eps)
        y_rem = _ln_rows(x2d[main:], weight, bias, eps)
        return jnp.concatenate([y_main, y_rem], axis=0)

    kc = k * c
    compiler_params = pltpu.CompilerParams(
        dimension_semantics=("parallel",),
        vmem_limit_bytes=_VMEM_LIMIT_BYTES)

    if k > 1:
        rows = n // k
        x_in = x2d.reshape(rows, kc)                         # free, contiguous reshape
        w_in = jnp.tile(weight.reshape(1, c), (1, k))        # (1, kc)
        b_in = jnp.tile(bias.reshape(1, c), (1, k))
        # Host-side 0/1 segment matrices (resident VMEM constants in-kernel).
        seg = np.arange(kc, dtype=np.int64) // c
        s_reduce = (seg[:, None] == np.arange(k)[None, :]).astype(np.float32)  # (kc, k)
        s_bcast = np.ascontiguousarray(s_reduce.T)                              # (k, kc)

        tm = _choose_row_tile(rows, kc, itemsize)
        grid = (pl.cdiv(rows, tm),)                          # ragged last block OK

        out = pl.pallas_call(
            functools.partial(_ln_rows_packed_kernel, eps=eps, c=c),
            out_shape=jax.ShapeDtypeStruct((rows, kc), x2d.dtype),
            grid_spec=pltpu.PrefetchScalarGridSpec(
                num_scalar_prefetch=0,
                grid=grid,
                in_specs=[
                    pl.BlockSpec((tm, kc), lambda i: (i, 0)),
                    pl.BlockSpec((1, kc), lambda i: (0, 0)),
                    pl.BlockSpec((1, kc), lambda i: (0, 0)),
                    pl.BlockSpec((kc, k), lambda i: (0, 0)),
                    pl.BlockSpec((k, kc), lambda i: (0, 0)),
                ],
                out_specs=pl.BlockSpec((tm, kc), lambda i: (i, 0)),
            ),
            compiler_params=compiler_params,
            cost_estimate=pl.CostEstimate(
                flops=10 * n * c + 8 * n * c * k,
                transcendentals=n,
                bytes_accessed=2 * n * c * itemsize),
        )(x_in, w_in, b_in, s_reduce, s_bcast)
        return out.reshape(n, c)

    # Unpacked path (C a multiple of 128, or packing not applicable).
    tm = _choose_row_tile(n, c, itemsize)
    grid = (pl.cdiv(n, tm),)

    out = pl.pallas_call(
        functools.partial(_ln_rows_kernel, eps=eps, c=c),
        out_shape=jax.ShapeDtypeStruct((n, c), x2d.dtype),
        grid_spec=pltpu.PrefetchScalarGridSpec(
            num_scalar_prefetch=0,
            grid=grid,
            in_specs=[
                pl.BlockSpec((tm, c), lambda i: (i, 0)),
                pl.BlockSpec((1, c), lambda i: (0, 0)),
                pl.BlockSpec((1, c), lambda i: (0, 0)),
            ],
            out_specs=pl.BlockSpec((tm, c), lambda i: (i, 0)),
        ),
        compiler_params=compiler_params,
        cost_estimate=pl.CostEstimate(
            flops=10 * n * c,
            transcendentals=n,
            bytes_accessed=2 * n * c * itemsize),
    )(x2d, weight.reshape(1, c), bias.reshape(1, c))
    return out


def _ln_channels_first(x, weight, bias, eps):
    """LayerNorm over axis 1 of (B, C, *spatial) without any transposes."""
    # TODO(synk): for C < 8 the sublane axis pads to 8; routing via the packed
    # channels_last path would avoid the padding, at the cost of a transpose.
    b_dim, c = x.shape[0], x.shape[1]
    hw = math.prod(x.shape[2:]) if len(x.shape) > 2 else 1
    itemsize = x.dtype.itemsize

    x3 = x.reshape(b_dim, c, hw)
    w3 = weight.reshape(1, c, 1)
    b3 = bias.reshape(1, c, 1)

    c_pad = _round_up(c, _sublane(itemsize))
    thw = _choose_lane_tile(hw, c_pad, b_dim)
    grid = (b_dim, pl.cdiv(hw, thw))                          # ragged last block OK

    out = pl.pallas_call(
        functools.partial(_ln_cf_kernel, eps=eps, c=c),
        out_shape=jax.ShapeDtypeStruct((b_dim, c, hw), x.dtype),
        grid_spec=pltpu.PrefetchScalarGridSpec(
            num_scalar_prefetch=0,
            grid=grid,
            in_specs=[
                pl.BlockSpec((1, c, thw), lambda i, j: (i, 0, j)),
                pl.BlockSpec((1, c, 1), lambda i, j: (0, 0, 0)),
                pl.BlockSpec((1, c, 1), lambda i, j: (0, 0, 0)),
            ],
            out_specs=pl.BlockSpec((1, c, thw), lambda i, j: (i, 0, j)),
        ),
        compiler_params=pltpu.CompilerParams(
            dimension_semantics=("parallel", "parallel"),
            vmem_limit_bytes=_VMEM_LIMIT_BYTES),
        cost_estimate=pl.CostEstimate(
            flops=10 * b_dim * hw * c,
            transcendentals=b_dim * hw,
            bytes_accessed=2 * b_dim * c * hw * itemsize),
    )(x3, w3, b3)

    return out.reshape(x.shape)


def layer_norm(x, weight, bias, eps=1e-6, data_format="channels_last"):
    """Equivalent of the PyTorch ConvNeXt LayerNorm.forward."""
    if data_format not in ("channels_last", "channels_first"):
        raise NotImplementedError
    if data_format == "channels_first":
        return _ln_channels_first(x, weight, bias, eps)
    orig_shape = x.shape
    c = orig_shape[-1]
    y = _ln_rows(x.reshape(-1, c), weight, bias, eps)
    return y.reshape(orig_shape)


# --------------------------------------------------------------------------
# Reference + tests
# --------------------------------------------------------------------------

def _reference(x, weight, bias, eps, data_format):
    xf = x.astype(jnp.float32)
    wf = weight.astype(jnp.float32)
    bf = bias.astype(jnp.float32)
    if data_format == "channels_first":
        u = xf.mean(axis=1, keepdims=True)
        s = ((xf - u) ** 2).mean(axis=1, keepdims=True)
        xn = (xf - u) / jnp.sqrt(s + eps)
        return wf[None, :, None, None] * xn + bf[None, :, None, None]
    u = xf.mean(axis=-1, keepdims=True)
    s = ((xf - u) ** 2).mean(axis=-1, keepdims=True)
    xn = (xf - u) / jnp.sqrt(s + eps)
    return xn * wf + bf


if __name__ == "__main__":
    key = jax.random.PRNGKey(0)
    eps = 1e-6
    k1, k2, k3, k4, k5, k6 = jax.random.split(key, 6)

    # --- spec shapes: B=2, C=4, H=W=16 (non-trivial affine params) ---
    C = 4
    weight = jax.random.normal(k1, (C,), dtype=jnp.float32)
    bias = jax.random.normal(k2, (C,), dtype=jnp.float32)

    # channels_first: NCHW (2, 4, 16, 16) — sublane-reduction kernel, no transposes.
    x_cf = jax.random.normal(k3, (2, C, 16, 16), dtype=jnp.float32)
    y_cf = jax.block_until_ready(
        layer_norm(x_cf, weight, bias, eps=eps, data_format="channels_first"))
    ref_cf = _reference(x_cf, weight, bias, eps, "channels_first")
    assert y_cf.shape == x_cf.shape
    assert jnp.allclose(y_cf, ref_cf, atol=1e-4, rtol=1e-4), "channels_first mismatch"

    # channels_last: NHWC (2, 16, 16, 4) — lane-packed path (k = 32, kc = 128).
    x_cl = jax.random.normal(k4, (2, 16, 16, C), dtype=jnp.float32)
    y_cl = jax.block_until_ready(
        layer_norm(x_cl, weight, bias, eps=eps, data_format="channels_last"))
    ref_cl = _reference(x_cl, weight, bias, eps, "channels_last")
    assert y_cl.shape == x_cl.shape
    assert jnp.allclose(y_cl, ref_cl, atol=1e-4, rtol=1e-4), "channels_last mismatch"

    # channels_last with C = 96 (ConvNeXt-realistic, not a multiple of 128):
    # packed path with k = 4, kc = 384 (full-width lane stores).
    C96 = 96
    w96 = jax.random.normal(k5, (C96,), dtype=jnp.float32)
    b96 = jax.random.normal(k6, (C96,), dtype=jnp.float32)
    x96 = jax.random.normal(k3, (2, 8, 8, C96), dtype=jnp.float32)
    y96 = jax.block_until_ready(
        layer_norm(x96, w96, b96, eps=eps, data_format="channels_last"))
    ref96 = _reference(x96, w96, b96, eps, "channels_last")
    assert jnp.allclose(y96, ref96, atol=1e-4, rtol=1e-4), "C=96 channels_last mismatch"

    # Same C = 96 in bf16 — exercises the f32-upconvert / bf16-store path and
    # the dtype-aware (16-row) sublane tiling.
    x96b = x96.astype(jnp.bfloat16)
    y96b = jax.block_until_ready(
        layer_norm(x96b, w96, b96, eps=eps, data_format="channels_last"))
    ref96b = _reference(x96b, w96, b96, eps, "channels_last")
    assert jnp.allclose(y96b.astype(jnp.float32), ref96b, atol=3e-2, rtol=3e-2), \
        "bf16 channels_last mismatch"

    # channels_last with C = 128 — plain lane-reduction path + ragged row tiles.
    C2 = 128
    w2 = jax.random.normal(k5, (C2,), dtype=jnp.float32)
    b2 = jax.random.normal(k1, (C2,), dtype=jnp.float32)
    x2 = jax.random.normal(k2, (2, 3, 5, C2), dtype=jnp.float32)
    y2 = jax.block_until_ready(
        layer_norm(x2, w2, b2, eps=eps, data_format="channels_last"))
    ref2 = _reference(x2, w2, b2, eps, "channels_last")
    assert jnp.allclose(y2, ref2, atol=1e-4, rtol=1e-4), "C=128 channels_last mismatch"

    # channels_last with rows not divisible by the pack factor (50 rows, k=32):
    # exercises the packed-bulk + unpacked-remainder split.
    x3 = jax.random.normal(k4, (2, 5, 5, C), dtype=jnp.float32)
    y3 = jax.block_until_ready(
        layer_norm(x3, weight, bias, eps=eps, data_format="channels_last"))
    ref3 = _reference(x3, weight, bias, eps, "channels_last")
    assert jnp.allclose(y3, ref3, atol=1e-4, rtol=1e-4), "split-remainder mismatch"

    print("KERNEL_OK")
</pallas_src>

<mosaic_0001>
module attributes {stable_mosaic.version = 11 : i64} {
  func.func @_ln_cf_kernel(%arg0: i32, %arg1: i32, %arg2: memref<1x4x128xf32, #tpu.memory_space<vmem>>, %arg3: memref<1x4x1xf32, #tpu.memory_space<vmem>>, %arg4: memref<1x4x1xf32, #tpu.memory_space<vmem>>, %arg5: memref<1x4x128xf32, #tpu.memory_space<vmem>>) attributes {dimension_semantics = [#tpu.dimension_semantics<parallel>, #tpu.dimension_semantics<parallel>], iteration_bounds = array<i64: 2, 2>, scalar_prefetch = 0 : i64, scratch_operands = 0 : i64, tpu.core_type = #tpu.core_type<tc>, window_params = [{transform_indices = @transform_0, window_bounds = array<i64: 1, 4, 128>}, {pipeline_mode = #tpu.pipeline_mode<synchronous>, transform_indices = @transform_1, window_bounds = array<i64: 1, 4, 1>}, {pipeline_mode = #tpu.pipeline_mode<synchronous>, transform_indices = @transform_2, window_bounds = array<i64: 1, 4, 1>}, {transform_indices = @transform_3, window_bounds = array<i64: 1, 4, 128>}]} {
    %c0 = arith.constant 0 : index
    %c0_0 = arith.constant 0 : index
    %c0_1 = arith.constant 0 : index
    %0 = vector.load %arg2[%c0, %c0_0, %c0_1] : memref<1x4x128xf32, #tpu.memory_space<vmem>>, vector<1x4x128xf32>
    %1 = vector.shape_cast %0 : vector<1x4x128xf32> to vector<4x128xf32>
    %c0_2 = arith.constant 0 : index
    %c0_3 = arith.constant 0 : index
    %c0_4 = arith.constant 0 : index
    %2 = vector.load %arg3[%c0_2, %c0_3, %c0_4] : memref<1x4x1xf32, #tpu.memory_space<vmem>>, vector<1x4x1xf32>
    %3 = vector.shape_cast %2 : vector<1x4x1xf32> to vector<4x1xf32>
    %c0_5 = arith.constant 0 : index
    %c0_6 = arith.constant 0 : index
    %c0_7 = arith.constant 0 : index
    %4 = vector.load %arg4[%c0_5, %c0_6, %c0_7] : memref<1x4x1xf32, #tpu.memory_space<vmem>>, vector<1x4x1xf32>
    %5 = vector.shape_cast %4 : vector<1x4x1xf32> to vector<4x1xf32>
    %cst = arith.constant dense<0.000000e+00> : vector<128xf32>
    %6 = vector.multi_reduction <add>, %1, %cst [0] : vector<4x128xf32> to vector<128xf32>
    %7 = vector.shape_cast %6 : vector<128xf32> to vector<1x128xf32>
    %cst_8 = arith.constant 2.500000e-01 : f32
    %8 = vector.broadcast %cst_8 : f32 to vector<1x128xf32>
    %9 = arith.mulf %7, %8 : vector<1x128xf32>
    %10 = vector.broadcast %9 : vector<1x128xf32> to vector<4x128xf32>
    %11 = arith.subf %1, %10 : vector<4x128xf32>
    %12 = arith.mulf %11, %11 : vector<4x128xf32>
    %cst_9 = arith.constant dense<0.000000e+00> : vector<128xf32>
    %13 = vector.multi_reduction <add>, %12, %cst_9 [0] : vector<4x128xf32> to vector<128xf32>
    %14 = vector.shape_cast %13 : vector<128xf32> to vector<1x128xf32>
    %cst_10 = arith.constant 2.500000e-01 : f32
    %15 = vector.broadcast %cst_10 : f32 to vector<1x128xf32>
    %16 = arith.mulf %14, %15 : vector<1x128xf32>
    %cst_11 = arith.constant 9.99999997E-7 : f32
    %17 = vector.broadcast %cst_11 : f32 to vector<1x128xf32>
    %18 = arith.addf %16, %17 : vector<1x128xf32>
    %19 = math.rsqrt %18 : vector<1x128xf32>
    %20 = vector.broadcast %19 : vector<1x128xf32> to vector<4x128xf32>
    %21 = arith.mulf %11, %20 : vector<4x128xf32>
    %22 = vector.broadcast %3 : vector<4x1xf32> to vector<4x128xf32>
    %23 = arith.mulf %21, %22 : vector<4x128xf32>
    %24 = vector.broadcast %5 : vector<4x1xf32> to vector<4x128xf32>
    %25 = arith.addf %23, %24 : vector<4x128xf32>
    %26 = vector.shape_cast %25 : vector<4x128xf32> to vector<1x4x128xf32>
    %c0_12 = arith.constant 0 : index
    %c0_13 = arith.constant 0 : index
    %c0_14 = arith.constant 0 : index
    %27 = vector.load %arg5[%c0_12, %c0_13, %c0_14] : memref<1x4x128xf32, #tpu.memory_space<vmem>>, vector<1x4x128xf32>
    tpu.vector_store %arg5[%c0_12, %c0_13, %c0_14], %26 {strides = array<i32>} : memref<1x4x128xf32, #tpu.memory_space<vmem>>, vector<1x4x128xf32>,
    return
  }
  func.func @transform_0(%arg0: i32, %arg1: i32) -> (i32, i32, i32) {
    %c0_i32 = arith.constant 0 : i32
    %c0_i32_0 = arith.constant 0 : i32
    return %arg0, %c0_i32, %arg1 : i32, i32, i32
  }
  func.func @transform_1(%arg0: i32, %arg1: i32) -> (i32, i32, i32) {
    %c0_i32 = arith.constant 0 : i32
    %c0_i32_0 = arith.constant 0 : i32
    %c0_i32_1 = arith.constant 0 : i32
    %c0_i32_2 = arith.constant 0 : i32
    return %c0_i32, %c0_i32_0, %c0_i32_1 : i32, i32, i32
  }
  func.func @transform_2(%arg0: i32, %arg1: i32) -> (i32, i32, i32) {
    %c0_i32 = arith.constant 0 : i32
    %c0_i32_0 = arith.constant 0 : i32
    %c0_i32_1 = arith.constant 0 : i32
    %c0_i32_2 = arith.constant 0 : i32
    return %c0_i32, %c0_i32_0, %c0_i32_1 : i32, i32, i32
  }
  func.func @transform_3(%arg0: i32, %arg1: i32) -> (i32, i32, i32) {
    %c0_i32 = arith.constant 0 : i32
    %c0_i32_0 = arith.constant 0 : i32
    return %arg0, %c0_i32, %arg1 : i32, i32, i32
  }
}

</mosaic_0001>

<llo_original>
// kernel: tpu_custom_call.1
$region0: #{tpu_custom_call.1}
  #allocation0 [shape = 'u32[]', space=smem, size = 0x4, offset = 0x4, fixed_abs, tag = 'smem constant byte address 0x4 - core index']
  #allocation1 [shape = 'u32[72,128]{1,0:T(1,128)}', space=vmem, size = 0x9000, scoped, tag = 'internal scratch']
  %s0 = inlined_call_operand.hbm [shape: f32[2,4,256], index: 0, kind: input, shape index: {}]
  %s1 = inlined_call_operand.vmem [shape: f32[1,4,1], index: 1, kind: input, shape index: {}]
  %s2 = inlined_call_operand.vmem [shape: f32[1,4,1], index: 2, kind: input, shape index: {}]
  %s3 = inlined_call_operand.hbm [shape: f32[2,4,256], index: 3, kind: output, shape index: {}]
  %s4 = sld [smem:[#allocation0]]
  $region49: #{tpu_custom_call.1} parent=0
    _
  %s6 = ssub.s32 1, %s4
  %s7 = scalar_select 0, %s6, %s4
  $region1: #{tpu_custom_call.1} parent=0
    #allocation2 [shape = 'u8[4096]{0}', space=vmem, size = 0x1000, scoped, tag = 'input window, operand 0']
    #allocation3 [shape = 's32[2]{0}', space=sflag, size = 0x8, scoped, tag = 'scoped memory for tpu_custom_call.1']
    #allocation4 [shape = 's32[2]{0}', space=sflag, size = 0x8, scoped, tag = 'scoped memory for tpu_custom_call.1']
    #allocation5 [shape = 'u8[4096]{0}', space=vmem, size = 0x1000, scoped, tag = 'output window, operand 0']
    %8 = vsyncpa [#allocation3], 0
    %s9 = scalar_lea.sflag [#allocation3], 1
    %10 = vsyncpa %s9, 0
    %11 = vsyncpa [#allocation4], 0
    %s12 = scalar_lea.sflag [#allocation4], 1
    %13 = vsyncpa %s12, 0
    loop: start=0, step=1, limit=6
    $region2: #{tpu_custom_call.1} parent=1 // loop_pre_header
      _
    $region3: #{tpu_custom_call.1} parent=1 // loop_header
      %s15 = sphi 0, %s19
      %p16 = scmp.ge.s32.totalorder %s15, 6
      %s22 = sphi 0, %s34
      %s23 = sphi 0, %s30
      %s24 = sphi 0, %s22
      %s25 = sphi 0, %s23
      %s26 = sphi 0, %s24
      %s27 = sphi 0, %s25
      %s39 = sphi 0, %s41
      %s42 = sphi 0, %s39
      %s43 = sphi 0, %s42
      %s59 = sphi 0, %s43
      %s63 = sphi 0, %s63
      %s65 = sphi 0, %s63
      %s66 = sphi 0, %s65
      %s80 = sphi 0, %s66
      %s84 = sphi 0, %s84
      %s86 = sphi 0, %s84
      %s87 = sphi 0, %s86
      %s101 = sphi 0, %s87
      %s109 = sphi 0, %s111
      %s112 = sphi 0, %s109
      %s113 = sphi 0, %s112
      %s129 = sphi 0, %s113
    $region4: #{tpu_custom_call.1} parent=1 // loop_header_branch
      %18 = sbr.rel (%p16) target = $region8
    $region5: #{tpu_custom_call.1} parent=1 // loop_body
      %s20 = ssub.s32 %s15, 1
      %s21 = ssub.s32 %s15, 2
      %s28 = sadd.s32 1, %s23
      %p29 = scmp.ge.s32.totalorder %s28, 2
      %s30 = scalar_select %p29, 0, %s28
      %s31 = sadd.s32 1, %s22
      %s32 = scalar_select %p29, %s31, %s22
      %p33 = scmp.ge.s32.totalorder %s32, 2
      %s34 = scalar_select %p33, 0, %s32
      %s35 = ssub.s32 %s22, %s34
      %s36 = ssub.s32 %s23, %s30
      %s37 = sor.u32 %s35, %s36
      %p38 = scmp.eq.s32.totalorder %s37, 0
      %s40 = sadd.s32 %s39, 1
      %s41 = scalar_select %p38, %s39, %s40
      %p44 = pneg %p38
      %p45 = scmp.eq.s32.totalorder %s15, 3
      %p46 = por %p44, %p45
      %p47 = scmp.ne.s32.totalorder %s39, %s42
      %p48 = scmp.eq.s32.totalorder %s15, 0
      %p49 = por %p47, %p48
      %p50 = scmp.ne.s32.totalorder %s39, %s42
      %p51 = scmp.eq.s32.totalorder %s20, 3
      %p52 = por %p50, %p51
      %p53 = scmp.ne.s32.totalorder %s42, %s43
      %p54 = scmp.eq.s32.totalorder %s20, 0
      %p55 = por %p53, %p54
      %p56 = scmp.ne.s32.totalorder %s42, %s43
      %p57 = scmp.eq.s32.totalorder %s21, 3
      %p58 = por %p56, %p57
      %p60 = scmp.ne.s32.totalorder %s43, %s59
      %p61 = scmp.eq.s32.totalorder %s21, 0
      %p62 = por %p60, %p61
      %s64 = sadd.s32 %s63, 1
      %p67 = scmp.eq.s32.totalorder %s15, 3
      %p68 = scmp.ne.s32.totalorder %s63, %s65
      %p69 = scmp.eq.s32.totalorder %s15, 0
      %p70 = por %p68, %p69
      %p71 = scmp.ne.s32.totalorder %s63, %s65
      %p72 = scmp.eq.s32.totalorder %s20, 3
      %p73 = por %p71, %p72
      %p74 = scmp.ne.s32.totalorder %s65, %s66
      %p75 = scmp.eq.s32.totalorder %s20, 0
      %p76 = por %p74, %p75
      %p77 = scmp.ne.s32.totalorder %s65, %s66
      %p78 = scmp.eq.s32.totalorder %s21, 3
      %p79 = por %p77, %p78
      %p81 = scmp.ne.s32.totalorder %s66, %s80
      %p82 = scmp.eq.s32.totalorder %s21, 0
      %p83 = por %p81, %p82
      %s85 = sadd.s32 %s84, 1
      %p88 = scmp.eq.s32.totalorder %s15, 3
      %p89 = scmp.ne.s32.totalorder %s84, %s86
      %p90 = scmp.eq.s32.totalorder %s15, 0
      %p91 = por %p89, %p90
      %p92 = scmp.ne.s32.totalorder %s84, %s86
      %p93 = scmp.eq.s32.totalorder %s20, 3
      %p94 = por %p92, %p93
      %p95 = scmp.ne.s32.totalorder %s86, %s87
      %p96 = scmp.eq.s32.totalorder %s20, 0
      %p97 = por %p95, %p96
      %p98 = scmp.ne.s32.totalorder %s86, %s87
      %p99 = scmp.eq.s32.totalorder %s21, 3
      %p100 = por %p98, %p99
      %p102 = scmp.ne.s32.totalorder %s87, %s101
      %p103 = scmp.eq.s32.totalorder %s21, 0
      %p104 = por %p102, %p103
      %s105 = ssub.s32 %s22, %s34
      %s106 = ssub.s32 %s23, %s30
      %s107 = sor.u32 %s105, %s106
      %p108 = scmp.eq.s32.totalorder %s107, 0
      %s110 = sadd.s32 %s109, 1
      %s111 = scalar_select %p108, %s109, %s110
      %p114 = pneg %p108
      %p115 = scmp.eq.s32.totalorder %s15, 3
      %p116 = por %p114, %p115
      %p117 = scmp.ne.s32.totalorder %s109, %s112
      %p118 = scmp.eq.s32.totalorder %s15, 0
      %p119 = por %p117, %p118
      %p120 = scmp.ne.s32.totalorder %s109, %s112
      %p121 = scmp.eq.s32.totalorder %s20, 3
      %p122 = por %p120, %p121
      %p123 = scmp.ne.s32.totalorder %s112, %s113
      %p124 = scmp.eq.s32.totalorder %s20, 0
      %p125 = por %p123, %p124
      %p126 = scmp.ne.s32.totalorder %s112, %s113
      %p127 = scmp.eq.s32.totalorder %s21, 3
      %p128 = por %p126, %p127
      %p130 = scmp.ne.s32.totalorder %s113, %s129
      %p131 = scmp.eq.s32.totalorder %s21, 0
      %p132 = por %p130, %p131
      %p133 = scmp.le.s32.totalorder 1, %s15
      %p134 = scmp.lt.s32.totalorder %s15, 5
      %p135 = pnand %p133, %p134
      %p136 = pneg %p135
      // Predicated region
      $region9: #{tpu_custom_call.1} parent=5 // pred_check
        _
      $region10: #{tpu_custom_call.1} parent=5 // pred_check_branch
        %138 = sbr.rel (%p135) target = $region12
      $region11: #{tpu_custom_call.1} parent=5 // pred_region
        %s139 = ssub.s32 %s15, 1
        // Predicated region
        $region13: #{tpu_custom_call.1} parent=11 // pred_check
          %p140 = pneg %p76
        $region14: #{tpu_custom_call.1} parent=11 // pred_check_branch
          %142 = sbr.rel (%p140) target = $region16
        $region15: #{tpu_custom_call.1} parent=11 // pred_region
          _
        $region16: #{tpu_custom_call.1} parent=11 // pred_fallthru
          _
        // Predicated region
        $region17: #{tpu_custom_call.1} parent=11 // pred_check
          %p143 = pneg %p97
        $region18: #{tpu_custom_call.1} parent=11 // pred_check_branch
          %145 = sbr.rel (%p143) target = $region20
        $region19: #{tpu_custom_call.1} parent=11 // pred_region
          _
        $region20: #{tpu_custom_call.1} parent=11 // pred_fallthru
          _
      $region12: #{tpu_custom_call.1} parent=5 // pred_fallthru
        _
      %p146 = scmp.lt.s32.totalorder %s15, 4
      // Predicated region
      $region21: #{tpu_custom_call.1} parent=5 // pred_check
        %p147 = pneg %p146
      $region22: #{tpu_custom_call.1} parent=5 // pred_check_branch
        %149 = sbr.rel (%p147) target = $region24
      $region23: #{tpu_custom_call.1} parent=5 // pred_region
        // Predicated region
        $region25: #{tpu_custom_call.1} parent=23 // pred_check
          %p150 = pneg %p49
        $region26: #{tpu_custom_call.1} parent=23 // pred_check_branch
          %152 = sbr.rel (%p150) target = $region28
        $region27: #{tpu_custom_call.1} parent=23 // pred_region
          %s153 = sand.u32 %s39, 1
          %s154 = scalar_lea.sflag [#allocation3], %s153
          %s155 = sand.u32 %s39, 1
          %s156 = smul.addr %s155, 4
          %s157 = scalar_lea.vmem [#allocation2], %s156
          %159 = vsyncadd %s154, 0
          %s160 = smul.addr %s22, 2
          %s161 = sadd.s32 %s23, %s160
          %s162 = smul.addr %s161, 4
          %s163 = scalar_lea.hbm %s0, %s162
          %s165 = sshll.u32 %s163, 4
          %s166 = int_to_ptr.hbm [resolvable:$true] %s165
          %s167 = sshll.u32 %s157, 4
          %s168 = int_to_ptr.vmem [resolvable:$true] %s167
          %170 = dma.hbm_to_vmem [thread:$0]  %s166, 64, %s168, %s154
        $region28: #{tpu_custom_call.1} parent=23 // pred_fallthru
          _
      $region24: #{tpu_custom_call.1} parent=5 // pred_fallthru
        _
      %p171 = scmp.le.s32.totalorder 1, %s15
      %p172 = scmp.lt.s32.totalorder %s15, 5
      %p173 = pnand %p171, %p172
      %p174 = pneg %p173
      // Predicated region
      $region29: #{tpu_custom_call.1} parent=5 // pred_check
        _
      $region30: #{tpu_custom_call.1} parent=5 // pred_check_branch
        %176 = sbr.rel (%p173) target = $region32
      $region31: #{tpu_custom_call.1} parent=5 // pred_region
        %s177 = ssub.s32 %s15, 1
        %s178 = sand.u32 %s42, 1
        %s179 = scalar_lea.sflag [#allocation3], %s178
        %s180 = sand.u32 %s42, 1
        %s181 = smul.addr %s180, 4
        %s182 = scalar_lea.vmem [#allocation2], %s181
        // Predicated region
        $region33: #{tpu_custom_call.1} parent=31 // pred_check
          %p183 = pneg %p55
        $region34: #{tpu_custom_call.1} parent=31 // pred_check_branch
          %185 = sbr.rel (%p183) target = $region36
        $region35: #{tpu_custom_call.1} parent=31 // pred_region
          %187 = dma.done %s179, 64
        $region36: #{tpu_custom_call.1} parent=31 // pred_fallthru
          _
        %s188 = sand.u32 %s42, 1
        %s189 = scalar_lea.sflag [#allocation3], %s188
        %s190 = sand.u32 %s42, 1
        %s191 = smul.addr %s190, 4
        %s192 = scalar_lea.vmem [#allocation2], %s191
        %p193 = pneg %p55
        %p194 = pneg %p52
        %p195 = pneg %p76
        %p196 = pneg %p73
        %p197 = pneg %p97
        %p198 = pneg %p94
        %p199 = pneg %p125
        %p200 = pneg %p122
        %s201 = sand.u32 %s112, 1
        %s202 = scalar_lea.sflag [#allocation4], %s201
        %s203 = sand.u32 %s112, 1
        %s204 = smul.addr %s203, 4
        %s205 = scalar_lea.vmem [#allocation5], %s204
        %v206 = vld [vmem:[%s182] sm:$0xf]
        %v207 = vld [vmem:[%s1] sm:$0xf]
        %v208 = vld [vmem:[%s2] sm:$0xf]
        %vm209 = vcmask 1043456
        %v210 = vsel %vm209, %v206, 0.0
        %v211 = vrot.slane %v210, 4
        %v212 = vadd.f32 %v210, %v211
        %v213 = vrot.slane %v212, 2
        %v214 = vadd.f32 %v212, %v213
        %v215 = vrot.slane %v214, 1
        %v216 = vadd.f32 %v214, %v215
        %v217 = vmul.f32 %v216, 0.25
        %v218 = vsub.f32 %v206, %v217
        %v219 = vmul.f32 %v218, %v218
        %v220 = vsel %vm209, %v219, 0.0
        %v221 = vrot.slane %v220, 4
        %v222 = vadd.f32 %v220, %v221
        %v223 = vrot.slane %v222, 2
        %v224 = vadd.f32 %v222, %v223
        %v225 = vrot.slane %v224, 1
        %v226 = vadd.f32 %v224, %v225
        %v227 = vmul.f32 %v226, 0.25
        %v228 = vadd.f32 %v227, 1e-06
        %v229 = vrsqrt.pop %v228
        %v230 = vmul.f32 %v229, %v228
        %v231 = vmul.f32 %v230, %v229
        %v232 = vmul.f32 0.5, %v231
        %v233 = vsub.f32 1.5, %v232
        %v234 = vmul.f32 %v229, %v233
        %vm235 = vweird.f32 %v228
        %vm236 = vweird.f32 %v229
        %vm237 = vmor %vm235, %vm236
        %v238 = vsel %vm237, %v229, %v234
        %v239 = vmul.f32 %v218, %v238
        %241 = vset.pattern.permute.xlu0 0
        %242 = vperm.xlu0 %241, %v207
        %v243 = vpop.permute.xlu0 %242
        %v245 = vmul.f32 %v239, %v243
        %247 = vset.pattern.permute.xlu0 0
        %248 = vperm.xlu0 %247, %v208
        %v249 = vpop.permute.xlu0 %248
        %v251 = vadd.f32 %v245, %v249
        %252 = vst [vmem:[%s205] sm:$0xf] %v251
        %s253 = sand.u32 %s112, 1
        %s254 = scalar_lea.sflag [#allocation4], %s253
        %s255 = sand.u32 %s112, 1
        %s256 = smul.addr %s255, 4
        %s257 = scalar_lea.vmem [#allocation5], %s256
        // Predicated region
        $region37: #{tpu_custom_call.1} parent=31 // pred_check
          %p258 = pneg %p122
        $region38: #{tpu_custom_call.1} parent=31 // pred_check_branch
          %260 = sbr.rel (%p258) target = $region40
        $region39: #{tpu_custom_call.1} parent=31 // pred_region
          %262 = vsyncadd %s254, 0
          %s263 = smul.addr %s24, 2
          %s264 = sadd.s32 %s25, %s263
          %s265 = smul.addr %s264, 4
          %s266 = scalar_lea.hbm %s3, %s265
          %s268 = sshll.u32 %s257, 4
          %s269 = int_to_ptr.vmem [resolvable:$true] %s268
          %s270 = sshll.u32 %s266, 4
          %s271 = int_to_ptr.hbm [resolvable:$true] %s270
          %273 = dma.vmem_to_hbm [thread:$0]  %s269, 64, %s271, %s254
        $region40: #{tpu_custom_call.1} parent=31 // pred_fallthru
          _
      $region32: #{tpu_custom_call.1} parent=5 // pred_fallthru
        _
      %p274 = scmp.le.s32.totalorder 2, %s15
      // Predicated region
      $region41: #{tpu_custom_call.1} parent=5 // pred_check
        %p275 = pneg %p274
      $region42: #{tpu_custom_call.1} parent=5 // pred_check_branch
        %277 = sbr.rel (%p275) target = $region44
      $region43: #{tpu_custom_call.1} parent=5 // pred_region
        %s278 = ssub.s32 %s15, 2
        // Predicated region
        $region45: #{tpu_custom_call.1} parent=43 // pred_check
          %p279 = pneg %p128
        $region46: #{tpu_custom_call.1} parent=43 // pred_check_branch
          %281 = sbr.rel (%p279) target = $region48
        $region47: #{tpu_custom_call.1} parent=43 // pred_region
          %s282 = sand.u32 %s113, 1
          %s283 = scalar_lea.sflag [#allocation4], %s282
          %s284 = sand.u32 %s113, 1
          %s285 = smul.addr %s284, 4
          %s286 = scalar_lea.vmem [#allocation5], %s285
          %288 = dma.done %s283, 64
        $region48: #{tpu_custom_call.1} parent=43 // pred_fallthru
          _
      $region44: #{tpu_custom_call.1} parent=5 // pred_fallthru
        _
    $region6: #{tpu_custom_call.1} parent=1 // loop_footer
      %s19 = sadd.s32 1, %s15
    $region7: #{tpu_custom_call.1} parent=1 // loop_footer_branch
      %14 = sbr.rel target = $region3
    $region8: #{tpu_custom_call.1} parent=1 // loop_exit
      _
    %289 = vsyncpa [#allocation3], 1
    %s290 = scalar_lea.sflag [#allocation3], 1
    %291 = vsyncpa %s290, 1
    %292 = vsyncpa [#allocation4], 1
    %s293 = scalar_lea.sflag [#allocation4], 1
    %294 = vsyncpa %s293, 1

</llo_original>
